<compile_context>
chip_gen: v7x
topology: tpu7x:2x2x1
jax: 0.10.0
libtpu: 0.0.40
codegen_flags: <defaults>
</compile_context>

<pallas_src>
import functools
import math

import jax
import jax.numpy as jnp
from jax.experimental import pallas as pl
from jax.experimental.pallas import tpu as pltpu


def ffn_kernel(x_ref, gamma_ref, beta_ref, w1_ref, b1_ref, w2_ref, b2_ref,
               o_ref, xn_ref, acc_ref, *, d_true, compute_dtype):
    """One (row-tile, F-tile) step of the feed-forward module.

    x_ref:      (TM, Dp)   input rows (padded feature dim)
    gamma/beta: (1, Dp)    LayerNorm affine params (zero padded)
    w1:         (Dp, TF)   first linear weight tile  (compute_dtype)
    b1:         (1, TF)    first linear bias tile
    w2:         (TF, Dp)   second linear weight tile (compute_dtype)
    b2:         (1, Dp)    second linear bias
    o_ref:      (TM, Dp)   output rows
    xn_ref:     (TM, Dp)   scratch: normalized input (compute_dtype)
    acc_ref:    (TM, Dp)   scratch: f32 accumulator over F tiles
    """
    f = pl.program_id(1)
    nf = pl.num_programs(1)

    # --- LayerNorm (eps=1e-5, biased variance) computed once per row tile ---
    @pl.when(f == 0)
    def _():
        x = x_ref[...].astype(jnp.float32)
        # Mask the padded feature lanes out of the statistics.
        lane = jax.lax.broadcasted_iota(jnp.int32, x.shape, 1)
        valid = lane < d_true
        inv_d = 1.0 / float(d_true)
        mean = jnp.sum(x, axis=-1, keepdims=True) * inv_d
        centered = jnp.where(valid, x - mean, 0.0)
        var = jnp.sum(centered * centered, axis=-1, keepdims=True) * inv_d
        xn = centered * jax.lax.rsqrt(var + 1e-5)
        xn = xn * gamma_ref[...].astype(jnp.float32) + beta_ref[...].astype(jnp.float32)
        xn_ref[...] = xn.astype(compute_dtype)
        acc_ref[...] = jnp.zeros_like(acc_ref)

    # --- Linear(dim_model -> TF slice of dim_ffn), bf16 operands, f32 acc ---
    h = jnp.dot(xn_ref[...], w1_ref[...], preferred_element_type=jnp.float32)
    h = h + b1_ref[...].astype(jnp.float32)

    # Swish / SiLU in f32 on the EUP. (inner dropout: identity in eval mode)
    h = h * jax.nn.sigmoid(h)

    # --- Linear(TF slice of dim_ffn -> dim_model), accumulate over F tiles ---
    acc_ref[...] += jnp.dot(h.astype(compute_dtype), w2_ref[...],
                            preferred_element_type=jnp.float32)

    # --- Finalize: add output bias and store once per row tile ---
    @pl.when(f == nf - 1)
    def _():
        y = acc_ref[...] + b2_ref[...].astype(jnp.float32)
        # (outer dropout: identity in eval mode)
        o_ref[...] = y.astype(o_ref.dtype)


def _round_up(x, m):
    return ((x + m - 1) // m) * m


def _pick_tile(total, max_tile, quantum):
    """Largest multiple of `quantum` that divides `total` and is <= max_tile."""
    best = quantum
    t = quantum
    while t <= min(total, max_tile):
        if total % t == 0:
            best = t
        t += quantum
    return best


def feed_forward_module(x, gamma, beta, w1, b1, w2, b2, *,
                        tile_rows=256, tile_ffn=512,
                        compute_dtype=jnp.bfloat16):
    """x: (B, L, D) -> (B, L, D)."""
    B, L, D = x.shape
    F = w1.shape[1]
    N = B * L

    # Lane-dense padded sizes.
    Dp = _round_up(D, 128)
    Fp = _round_up(F, 128)

    # Row tile: multiple of 8 (sublanes); pad N up to a multiple of it.
    TM = min(tile_rows, _round_up(N, 8))
    Np = _round_up(N, TM)

    # Hidden-dim tile: multiple of 128 dividing Fp.
    TF = _pick_tile(Fp, tile_ffn, 128)

    # --- Pad / lay out operands (feature dims last => 128-lane axis). ---
    x2 = jnp.pad(x.reshape(N, D), ((0, Np - N), (0, Dp - D)))
    gamma_p = jnp.pad(gamma.reshape(1, D).astype(jnp.float32), ((0, 0), (0, Dp - D)))
    beta_p = jnp.pad(beta.reshape(1, D).astype(jnp.float32), ((0, 0), (0, Dp - D)))
    w1_p = jnp.pad(w1, ((0, Dp - D), (0, Fp - F))).astype(compute_dtype)
    b1_p = jnp.pad(b1.reshape(1, F).astype(jnp.float32), ((0, 0), (0, Fp - F)))
    w2_p = jnp.pad(w2, ((0, Fp - F), (0, Dp - D))).astype(compute_dtype)
    b2_p = jnp.pad(b2.reshape(1, D).astype(jnp.float32), ((0, 0), (0, Dp - D)))

    grid = (Np // TM, Fp // TF)

    # --- Rough VMEM budget (double-buffered pipelined blocks + scratch). ---
    cd_bytes = jnp.dtype(compute_dtype).itemsize
    io_bytes = x.dtype.itemsize
    vmem = 2 * (TM * Dp * io_bytes)                # x tiles
    vmem += 2 * (TM * Dp * io_bytes)               # out tiles
    vmem += 2 * (Dp * TF + TF * Dp) * cd_bytes     # w1 / w2 tiles
    vmem += 2 * (TF + 3 * Dp) * 4                  # b1, gamma, beta, b2
    vmem += TM * Dp * (cd_bytes + 4)               # xn + acc scratch
    vmem_limit = min(int(vmem * 1.25) + (4 << 20), 64 << 20)

    cost = pl.CostEstimate(
        flops=int(4 * N * D * F),                  # two matmuls
        transcendentals=int(N * F + N),            # sigmoid + rsqrt
        bytes_accessed=int(2 * N * D * io_bytes
                           + 2 * D * F * cd_bytes
                           + (D + F + 2 * D) * 4),
    )

    kernel = functools.partial(ffn_kernel, d_true=D, compute_dtype=compute_dtype)

    out = pl.pallas_call(
        kernel,
        out_shape=jax.ShapeDtypeStruct((Np, Dp), x.dtype),
        grid_spec=pltpu.PrefetchScalarGridSpec(
            num_scalar_prefetch=0,
            grid=grid,
            in_specs=[
                pl.BlockSpec((TM, Dp), lambda i, f: (i, 0)),   # x rows
                pl.BlockSpec((1, Dp), lambda i, f: (0, 0)),    # gamma
                pl.BlockSpec((1, Dp), lambda i, f: (0, 0)),    # beta
                pl.BlockSpec((Dp, TF), lambda i, f: (0, f)),   # w1 tile
                pl.BlockSpec((1, TF), lambda i, f: (0, f)),    # b1 tile
                pl.BlockSpec((TF, Dp), lambda i, f: (f, 0)),   # w2 tile
                pl.BlockSpec((1, Dp), lambda i, f: (0, 0)),    # b2
            ],
            out_specs=pl.BlockSpec((TM, Dp), lambda i, f: (i, 0)),
            scratch_shapes=[
                pltpu.VMEM((TM, Dp), compute_dtype),  # normalized input
                pltpu.VMEM((TM, Dp), jnp.float32),    # output accumulator
            ],
        ),
        compiler_params=pltpu.CompilerParams(
            dimension_semantics=("parallel", "arbitrary"),
            vmem_limit_bytes=vmem_limit,
        ),
        cost_estimate=cost,
    )(x2, gamma_p, beta_p, w1_p, b1_p, w2_p, b2_p)

    return out[:N, :D].reshape(B, L, D)


def feed_forward_reference(x, gamma, beta, w1, b1, w2, b2):
    """Pure-JAX f32 reference for correctness checking."""
    xf = x.astype(jnp.float32)
    mean = jnp.mean(xf, axis=-1, keepdims=True)
    var = jnp.mean((xf - mean) ** 2, axis=-1, keepdims=True)
    xn = (xf - mean) * jax.lax.rsqrt(var + 1e-5)
    xn = xn * gamma + beta
    h = xn @ w1 + b1
    h = h * jax.nn.sigmoid(h)
    y = h @ w2 + b2
    return y.astype(x.dtype)


if __name__ == "__main__":
    # Small shapes consistent with the module's forward: (B, L, dim_model)
    B, L, D, F = 2, 8, 32, 64

    key = jax.random.PRNGKey(0)
    kx, kw1, kb1, kw2, kb2 = jax.random.split(key, 5)

    x = jax.random.normal(kx, (B, L, D), dtype=jnp.float32)

    # Deterministic parameter init (synthetic; shapes from __init__).
    gamma = jnp.ones((D,), dtype=jnp.float32)      # LayerNorm weight
    beta = jnp.zeros((D,), dtype=jnp.float32)      # LayerNorm bias
    w1 = jax.random.normal(kw1, (D, F), dtype=jnp.float32) * (1.0 / math.sqrt(D))
    b1 = jax.random.normal(kb1, (F,), dtype=jnp.float32) * 0.01
    w2 = jax.random.normal(kw2, (F, D), dtype=jnp.float32) * (1.0 / math.sqrt(F))
    b2 = jax.random.normal(kb2, (D,), dtype=jnp.float32) * 0.01

    ffn = jax.jit(feed_forward_module)
    out = jax.block_until_ready(ffn(x, gamma, beta, w1, b1, w2, b2))

    ref = feed_forward_reference(x, gamma, beta, w1, b1, w2, b2)
    assert out.shape == (B, L, D), out.shape
    # bf16 MXU operands with f32 accumulation => loosen tolerance vs f32 ref.
    assert jnp.allclose(out, ref, atol=5e-2, rtol=5e-2), (
        float(jnp.max(jnp.abs(out - ref))))

    print("KERNEL_OK")
</pallas_src>

<mosaic_0001>
module attributes {stable_mosaic.version = 11 : i64} {
  func.func @ffn_kernel(%arg0: i32, %arg1: i32, %arg2: memref<16x128xf32, #tpu.memory_space<vmem>>, %arg3: memref<1x128xf32, #tpu.memory_space<vmem>>, %arg4: memref<1x128xf32, #tpu.memory_space<vmem>>, %arg5: memref<128x128xbf16, #tpu.memory_space<vmem>>, %arg6: memref<1x128xf32, #tpu.memory_space<vmem>>, %arg7: memref<128x128xbf16, #tpu.memory_space<vmem>>, %arg8: memref<1x128xf32, #tpu.memory_space<vmem>>, %arg9: memref<16x128xf32, #tpu.memory_space<vmem>>, %arg10: memref<16x128xbf16, #tpu.memory_space<vmem>>, %arg11: memref<16x128xf32, #tpu.memory_space<vmem>>) attributes {dimension_semantics = [#tpu.dimension_semantics<parallel>, #tpu.dimension_semantics<arbitrary>], iteration_bounds = array<i64: 1, 1>, scalar_prefetch = 0 : i64, scratch_operands = 2 : i64, tpu.core_type = #tpu.core_type<tc>, window_params = [{transform_indices = @transform_0, window_bounds = array<i64: 16, 128>}, {pipeline_mode = #tpu.pipeline_mode<synchronous>, transform_indices = @transform_1, window_bounds = array<i64: 1, 128>}, {pipeline_mode = #tpu.pipeline_mode<synchronous>, transform_indices = @transform_2, window_bounds = array<i64: 1, 128>}, {transform_indices = @transform_3, window_bounds = array<i64: 128, 128>}, {transform_indices = @transform_4, window_bounds = array<i64: 1, 128>}, {transform_indices = @transform_5, window_bounds = array<i64: 128, 128>}, {pipeline_mode = #tpu.pipeline_mode<synchronous>, transform_indices = @transform_6, window_bounds = array<i64: 1, 128>}, {transform_indices = @transform_7, window_bounds = array<i64: 16, 128>}]} {
    %c0_i32 = arith.constant 0 : i32
    %0 = arith.cmpi eq, %arg1, %c0_i32 : i32
    %1 = arith.extui %0 : i1 to i32
    %c0_i32_0 = arith.constant 0 : i32
    %2 = arith.cmpi ne, %1, %c0_i32_0 : i32
    scf.if %2 {
      %c0_16 = arith.constant 0 : index
      %c0_17 = arith.constant 0 : index
      %24 = vector.load %arg2[%c0_16, %c0_17] : memref<16x128xf32, #tpu.memory_space<vmem>>, vector<16x128xf32>
      %25 = tpu.iota {dimensions = array<i32: 1>} : vector<16x128xi32>
      %c32_i32 = arith.constant 32 : i32
      %26 = vector.broadcast %c32_i32 : i32 to vector<16x128xi32>
      %27 = arith.cmpi slt, %25, %26 : vector<16x128xi32>
      %cst_18 = arith.constant dense<0.000000e+00> : vector<16xf32>
      %28 = vector.multi_reduction <add>, %24, %cst_18 [1] : vector<16x128xf32> to vector<16xf32>
      %29 = vector.shape_cast %28 : vector<16xf32> to vector<16x1xf32>
      %cst_19 = arith.constant 3.125000e-02 : f32
      %30 = vector.broadcast %cst_19 : f32 to vector<16x1xf32>
      %31 = arith.mulf %29, %30 : vector<16x1xf32>
      %32 = vector.broadcast %31 : vector<16x1xf32> to vector<16x128xf32>
      %33 = arith.subf %24, %32 : vector<16x128xf32>
      %cst_20 = arith.constant 0.000000e+00 : f32
      %34 = vector.broadcast %cst_20 : f32 to vector<16x128xf32>
      %35 = arith.select %27, %33, %34 : vector<16x128xi1>, vector<16x128xf32>
      %36 = arith.mulf %35, %35 : vector<16x128xf32>
      %cst_21 = arith.constant dense<0.000000e+00> : vector<16xf32>
      %37 = vector.multi_reduction <add>, %36, %cst_21 [1] : vector<16x128xf32> to vector<16xf32>
      %38 = vector.shape_cast %37 : vector<16xf32> to vector<16x1xf32>
      %cst_22 = arith.constant 3.125000e-02 : f32
      %39 = vector.broadcast %cst_22 : f32 to vector<16x1xf32>
      %40 = arith.mulf %38, %39 : vector<16x1xf32>
      %cst_23 = arith.constant 9.99999974E-6 : f32
      %41 = vector.broadcast %cst_23 : f32 to vector<16x1xf32>
      %42 = arith.addf %40, %41 : vector<16x1xf32>
      %43 = math.rsqrt %42 : vector<16x1xf32>
      %44 = vector.broadcast %43 : vector<16x1xf32> to vector<16x128xf32>
      %45 = arith.mulf %35, %44 : vector<16x128xf32>
      %c0_24 = arith.constant 0 : index
      %c0_25 = arith.constant 0 : index
      %46 = vector.load %arg3[%c0_24, %c0_25] : memref<1x128xf32, #tpu.memory_space<vmem>>, vector<1x128xf32>
      %47 = vector.broadcast %46 : vector<1x128xf32> to vector<16x128xf32>
      %48 = arith.mulf %45, %47 : vector<16x128xf32>
      %c0_26 = arith.constant 0 : index
      %c0_27 = arith.constant 0 : index
      %49 = vector.load %arg4[%c0_26, %c0_27] : memref<1x128xf32, #tpu.memory_space<vmem>>, vector<1x128xf32>
      %50 = vector.broadcast %49 : vector<1x128xf32> to vector<16x128xf32>
      %51 = arith.addf %48, %50 : vector<16x128xf32>
      %52 = arith.truncf %51 : vector<16x128xf32> to vector<16x128xbf16>
      %c0_28 = arith.constant 0 : index
      %c0_29 = arith.constant 0 : index
      %53 = vector.load %arg10[%c0_28, %c0_29] : memref<16x128xbf16, #tpu.memory_space<vmem>>, vector<16x128xbf16>
      tpu.vector_store %arg10[%c0_28, %c0_29], %52 {strides = array<i32>} : memref<16x128xbf16, #tpu.memory_space<vmem>>, vector<16x128xbf16>,
      %cst_30 = arith.constant 0.000000e+00 : f32
      %54 = vector.broadcast %cst_30 : f32 to vector<16x128xf32>
      %c0_31 = arith.constant 0 : index
      %c0_32 = arith.constant 0 : index
      %55 = vector.load %arg11[%c0_31, %c0_32] : memref<16x128xf32, #tpu.memory_space<vmem>>, vector<16x128xf32>
      tpu.vector_store %arg11[%c0_31, %c0_32], %54 {strides = array<i32>} : memref<16x128xf32, #tpu.memory_space<vmem>>, vector<16x128xf32>,
    } else {
    }
    %c0 = arith.constant 0 : index
    %c0_1 = arith.constant 0 : index
    %3 = vector.load %arg10[%c0, %c0_1] : memref<16x128xbf16, #tpu.memory_space<vmem>>, vector<16x128xbf16>
    %c0_2 = arith.constant 0 : index
    %c0_3 = arith.constant 0 : index
    %4 = vector.load %arg5[%c0_2, %c0_3] : memref<128x128xbf16, #tpu.memory_space<vmem>>, vector<128x128xbf16>
    %cst = arith.constant dense<0.000000e+00> : vector<16x128xf32>
    %5 = tpu.matmul %3, %4, %cst {dimension_numbers = #tpu.dot_dimension_numbers<[1], [0], [0], [1], [0, 0, 1, 1], [], []>} : vector<16x128xbf16>, vector<128x128xbf16>, vector<16x128xf32> -> vector<16x128xf32>
    %c0_4 = arith.constant 0 : index
    %c0_5 = arith.constant 0 : index
    %6 = vector.load %arg6[%c0_4, %c0_5] : memref<1x128xf32, #tpu.memory_space<vmem>>, vector<1x128xf32>
    %7 = vector.broadcast %6 : vector<1x128xf32> to vector<16x128xf32>
    %8 = arith.addf %5, %7 : vector<16x128xf32>
    %9 = arith.negf %8 : vector<16x128xf32>
    %10 = math.exp %9 : vector<16x128xf32>
    %cst_6 = arith.constant 1.000000e+00 : f32
    %11 = vector.broadcast %cst_6 : f32 to vector<16x128xf32>
    %12 = arith.addf %11, %10 : vector<16x128xf32>
    %13 = arith.divf %11, %12 : vector<16x128xf32>
    %14 = arith.mulf %8, %13 : vector<16x128xf32>
    %c0_7 = arith.constant 0 : index
    %c0_8 = arith.constant 0 : index
    %15 = vector.load %arg11[%c0_7, %c0_8] : memref<16x128xf32, #tpu.memory_space<vmem>>, vector<16x128xf32>
    %16 = arith.truncf %14 : vector<16x128xf32> to vector<16x128xbf16>
    %c0_9 = arith.constant 0 : index
    %c0_10 = arith.constant 0 : index
    %17 = vector.load %arg7[%c0_9, %c0_10] : memref<128x128xbf16, #tpu.memory_space<vmem>>, vector<128x128xbf16>
    %cst_11 = arith.constant dense<0.000000e+00> : vector<16x128xf32>
    %18 = tpu.matmul %16, %17, %cst_11 {dimension_numbers = #tpu.dot_dimension_numbers<[1], [0], [0], [1], [0, 0, 1, 1], [], []>} : vector<16x128xbf16>, vector<128x128xbf16>, vector<16x128xf32> -> vector<16x128xf32>
    %19 = arith.addf %15, %18 : vector<16x128xf32>
    %c0_12 = arith.constant 0 : index
    %c0_13 = arith.constant 0 : index
    %20 = vector.load %arg11[%c0_12, %c0_13] : memref<16x128xf32, #tpu.memory_space<vmem>>, vector<16x128xf32>
    tpu.vector_store %arg11[%c0_12, %c0_13], %19 {strides = array<i32>} : memref<16x128xf32, #tpu.memory_space<vmem>>, vector<16x128xf32>,
    %c0_i32_14 = arith.constant 0 : i32
    %21 = arith.cmpi eq, %arg1, %c0_i32_14 : i32
    %22 = arith.extui %21 : i1 to i32
    %c0_i32_15 = arith.constant 0 : i32
    %23 = arith.cmpi ne, %22, %c0_i32_15 : i32
    scf.if %23 {
      %c0_16 = arith.constant 0 : index
      %c0_17 = arith.constant 0 : index
      %24 = vector.load %arg11[%c0_16, %c0_17] : memref<16x128xf32, #tpu.memory_space<vmem>>, vector<16x128xf32>
      %c0_18 = arith.constant 0 : index
      %c0_19 = arith.constant 0 : index
      %25 = vector.load %arg8[%c0_18, %c0_19] : memref<1x128xf32, #tpu.memory_space<vmem>>, vector<1x128xf32>
      %26 = vector.broadcast %25 : vector<1x128xf32> to vector<16x128xf32>
      %27 = arith.addf %24, %26 : vector<16x128xf32>
      %c0_20 = arith.constant 0 : index
      %c0_21 = arith.constant 0 : index
      %28 = vector.load %arg9[%c0_20, %c0_21] : memref<16x128xf32, #tpu.memory_space<vmem>>, vector<16x128xf32>
      tpu.vector_store %arg9[%c0_20, %c0_21], %27 {strides = array<i32>} : memref<16x128xf32, #tpu.memory_space<vmem>>, vector<16x128xf32>,
    } else {
    }
    return
  }
  func.func @transform_0(%arg0: i32, %arg1: i32) -> (i32, i32) {
    %c0_i32 = arith.constant 0 : i32
    %c0_i32_0 = arith.constant 0 : i32
    return %arg0, %c0_i32 : i32, i32
  }
  func.func @transform_1(%arg0: i32, %arg1: i32) -> (i32, i32) {
    %c0_i32 = arith.constant 0 : i32
    %c0_i32_0 = arith.constant 0 : i32
    %c0_i32_1 = arith.constant 0 : i32
    return %c0_i32, %c0_i32_0 : i32, i32
  }
  func.func @transform_2(%arg0: i32, %arg1: i32) -> (i32, i32) {
    %c0_i32 = arith.constant 0 : i32
    %c0_i32_0 = arith.constant 0 : i32
    %c0_i32_1 = arith.constant 0 : i32
    return %c0_i32, %c0_i32_0 : i32, i32
  }
  func.func @transform_3(%arg0: i32, %arg1: i32) -> (i32, i32) {
    %c0_i32 = arith.constant 0 : i32
    %c0_i32_0 = arith.constant 0 : i32
    return %c0_i32, %arg1 : i32, i32
  }
  func.func @transform_4(%arg0: i32, %arg1: i32) -> (i32, i32) {
    %c0_i32 = arith.constant 0 : i32
    %c0_i32_0 = arith.constant 0 : i32
    return %c0_i32, %arg1 : i32, i32
  }
  func.func @transform_5(%arg0: i32, %arg1: i32) -> (i32, i32) {
    %c0_i32 = arith.constant 0 : i32
    %c0_i32_0 = arith.constant 0 : i32
    return %arg1, %c0_i32 : i32, i32
  }
  func.func @transform_6(%arg0: i32, %arg1: i32) -> (i32, i32) {
    %c0_i32 = arith.constant 0 : i32
    %c0_i32_0 = arith.constant 0 : i32
    %c0_i32_1 = arith.constant 0 : i32
    return %c0_i32, %c0_i32_0 : i32, i32
  }
  func.func @transform_7(%arg0: i32, %arg1: i32) -> (i32, i32) {
    %c0_i32 = arith.constant 0 : i32
    %c0_i32_0 = arith.constant 0 : i32
    return %arg0, %c0_i32 : i32, i32
  }
}

</mosaic_0001>

<llo_original>
// kernel: feed_forward_module.1
$region0: #{feed_forward_module.1}
  #allocation0 [shape = 'u32[]', space=smem, size = 0x4, offset = 0x4, fixed_abs, tag = 'smem constant byte address 0x4 - core index']
  #allocation1 [shape = 'u32[144,128]{1,0:T(1,128)}', space=vmem, size = 0x12000, scoped, tag = 'internal scratch']
  #allocation2 [shape = 'bf16[16,128]{1,0:T(16,128)(2,1)}', space=vmem, size = 0x1000, scoped, tag = 'scratch operand']
  #allocation3 [shape = 'f32[16,128]{1,0:T(8,128)}', space=vmem, size = 0x2000, scoped, tag = 'scratch operand']
  %s0 = inlined_call_operand.vmem [shape: f32[16,128], index: 0, kind: input, shape index: {}]
  %s1 = inlined_call_operand.vmem [shape: f32[1,128], index: 1, kind: input, shape index: {}]
  %s2 = inlined_call_operand.vmem [shape: f32[1,128], index: 2, kind: input, shape index: {}]
  %s3 = inlined_call_operand.vmem [shape: bf16[128,128], index: 3, kind: input, shape index: {}]
  %s4 = inlined_call_operand.vmem [shape: f32[1,128], index: 4, kind: input, shape index: {}]
  %s5 = inlined_call_operand.vmem [shape: bf16[128,128], index: 5, kind: input, shape index: {}]
  %s6 = inlined_call_operand.vmem [shape: f32[1,128], index: 6, kind: input, shape index: {}]
  %s7 = inlined_call_operand.vmem [shape: f32[16,128], index: 7, kind: output, shape index: {}]
  %s8 = sld [smem:[#allocation0]]
  $region46: #{feed_forward_module.1} parent=0
    _
  %s10 = ssub.s32 1, %s8
  %s11 = scalar_select 0, %s10, %s8
  // Predicated region
  $region2: #{feed_forward_module.1} parent=0 // pred_check
    _
  $region3: #{feed_forward_module.1} parent=0 // pred_check_branch
    %13 = sbr.rel (0) target = $region5
  $region4: #{feed_forward_module.1} parent=0 // pred_region
    _
  $region5: #{feed_forward_module.1} parent=0 // pred_fallthru
    _
  // Predicated region
  $region6: #{feed_forward_module.1} parent=0 // pred_check
    _
  $region7: #{feed_forward_module.1} parent=0 // pred_check_branch
    %15 = sbr.rel (0) target = $region9
  $region8: #{feed_forward_module.1} parent=0 // pred_region
    _
  $region9: #{feed_forward_module.1} parent=0 // pred_fallthru
    _
  // Predicated region
  $region10: #{feed_forward_module.1} parent=0 // pred_check
    _
  $region11: #{feed_forward_module.1} parent=0 // pred_check_branch
    %17 = sbr.rel (0) target = $region13
  $region12: #{feed_forward_module.1} parent=0 // pred_region
    _
  $region13: #{feed_forward_module.1} parent=0 // pred_fallthru
    _
  // Predicated region
  $region14: #{feed_forward_module.1} parent=0 // pred_check
    _
  $region15: #{feed_forward_module.1} parent=0 // pred_check_branch
    %19 = sbr.rel (0) target = $region17
  $region16: #{feed_forward_module.1} parent=0 // pred_region
    _
  $region17: #{feed_forward_module.1} parent=0 // pred_fallthru
    _
  // Predicated region
  $region18: #{feed_forward_module.1} parent=0 // pred_check
    _
  $region19: #{feed_forward_module.1} parent=0 // pred_check_branch
    %21 = sbr.rel (0) target = $region21
  $region20: #{feed_forward_module.1} parent=0 // pred_region
    _
  $region21: #{feed_forward_module.1} parent=0 // pred_fallthru
    _
  // Predicated region
  $region22: #{feed_forward_module.1} parent=0 // pred_check
    _
  $region23: #{feed_forward_module.1} parent=0 // pred_check_branch
    %23 = sbr.rel (0) target = $region25
  $region24: #{feed_forward_module.1} parent=0 // pred_region
    _
  $region25: #{feed_forward_module.1} parent=0 // pred_fallthru
    _
  // Predicated region
  $region26: #{feed_forward_module.1} parent=0 // pred_check
    _
  $region27: #{feed_forward_module.1} parent=0 // pred_check_branch
    %25 = sbr.rel (0) target = $region29
  $region28: #{feed_forward_module.1} parent=0 // pred_region
    _
  $region29: #{feed_forward_module.1} parent=0 // pred_fallthru
    _
  %p27 = scmp.eq.s32.totalorder 0, 0
  // Predicated region
  $region30: #{feed_forward_module.1} parent=0 // pred_check
    %p28 = pneg %p27
  $region31: #{feed_forward_module.1} parent=0 // pred_check_branch
    %30 = sbr.rel (%p28) target = $region33
  $region32: #{feed_forward_module.1} parent=0 // pred_region
    %v31 = vld [vmem:[%s0] sm:$0xff]
    %v32 = vld [vmem:[%s0 + $0x8] sm:$0xff]
    %v33 = vlaneseq
    %v34 = vand.u32 %v33, 127
    %vm35 = vcmp.lt.s32.totalorder %v34, 32
    %36 = vadd.xlane.f32.xlu0 %v31
    %v37 = vpop.xlane.xlu0 %36
    %38 = vadd.xlane.f32.xlu0 %v32
    %v39 = vpop.xlane.xlu0 %38
    %v40 = vmul.f32 %v37, 0.03125
    %v41 = vmul.f32 %v39, 0.03125
    %v42 = vsub.f32 %v31, %v40
    %v43 = vsub.f32 %v32, %v41
    %v44 = vsel %vm35, %v42, 0.0
    %v45 = vsel %vm35, %v43, 0.0
    %v46 = vmul.f32 %v44, %v44
    %v47 = vmul.f32 %v45, %v45
    %48 = vadd.xlane.f32.xlu0 %v46
    %v49 = vpop.xlane.xlu0 %48
    %50 = vadd.xlane.f32.xlu0 %v47
    %v51 = vpop.xlane.xlu0 %50
    %v52 = vmul.f32 %v49, 0.03125
    %v53 = vmul.f32 %v51, 0.03125
    %v54 = vadd.f32 %v52, 1e-05
    %v55 = vadd.f32 %v53, 1e-05
    %v56 = vrsqrt.pop %v54
    %v57 = vrsqrt.pop %v55
    %v58 = vmul.f32 %v44, %v56
    %v59 = vmul.f32 %v45, %v57
    %v60 = vld [vmem:[%s1] sm:$0x1]
    %v62 = vlaneseq
    %v63 = vshrl.u32 %v62, 7
    %v64 = vsub.s32 0, %v63
    %v65 = vrot.slane %v60, %v64
    %v67 = vmul.f32 %v58, %v65
    %v68 = vmul.f32 %v59, %v65
    %v69 = vld [vmem:[%s2] sm:$0x1]
    %v71 = vlaneseq
    %v72 = vshrl.u32 %v71, 7
    %v73 = vsub.s32 0, %v72
    %v74 = vrot.slane %v69, %v73
    %v76 = vadd.f32 %v67, %v74
    %v77 = vadd.f32 %v68, %v74
    %v78 = vpack.c.bf16 %v77, %v76
    %79 = vst [vmem:[#allocation2] sm:$0xff] %v78
    %80 = vst [vmem:[#allocation3] sm:$0xff] 0.0
    %81 = vst [vmem:[#allocation3 + $0x8] sm:$0xff] 0.0
  $region33: #{feed_forward_module.1} parent=0 // pred_fallthru
    _
  %v82 = vld [vmem:[#allocation2] sm:$0xff]
  %v83 = vld [vmem:[%s3] sm:$0xf]
  %v84 = vld [vmem:[%s3 + $0x4] sm:$0xf]
  %v85 = vld [vmem:[%s3 + $0x8] sm:$0xf]
  %v86 = vld [vmem:[%s3 + $0xc] sm:$0xf]
  %v87 = vld [vmem:[%s3 + $0x10] sm:$0xf]
  %v88 = vld [vmem:[%s3 + $0x14] sm:$0xf]
  %v89 = vld [vmem:[%s3 + $0x18] sm:$0xf]
  %v90 = vld [vmem:[%s3 + $0x1c] sm:$0xf]
  %v91 = vld [vmem:[%s3 + $0x20] sm:$0xf]
  %v92 = vld [vmem:[%s3 + $0x24] sm:$0xf]
  %v93 = vld [vmem:[%s3 + $0x28] sm:$0xf]
  %v94 = vld [vmem:[%s3 + $0x2c] sm:$0xf]
  %v95 = vld [vmem:[%s3 + $0x30] sm:$0xf]
  %v96 = vld [vmem:[%s3 + $0x34] sm:$0xf]
  %v97 = vld [vmem:[%s3 + $0x38] sm:$0xf]
  %v98 = vld [vmem:[%s3 + $0x3c] sm:$0xf]
  %v99 = vld [vmem:[%s4] sm:$0x1]
  %v101 = vlaneseq
  %v102 = vshrl.u32 %v101, 7
  %v103 = vsub.s32 0, %v102
  %v104 = vrot.slane %v99, %v103
  %v122 = vunpack.c.l.b16 %v83
  %v123 = vunpack.c.l.b16 %v84
  %v124 = vunpack.c.l.b16 %v85
  %v125 = vunpack.c.l.b16 %v86
  %v126 = vunpack.c.l.b16 %v87
  %v127 = vunpack.c.l.b16 %v88
  %v128 = vunpack.c.l.b16 %v89
  %v129 = vunpack.c.l.b16 %v90
  %v130 = vunpack.c.l.b16 %v91
  %v131 = vunpack.c.l.b16 %v92
  %v132 = vunpack.c.l.b16 %v93
  %v133 = vunpack.c.l.b16 %v94
  %v134 = vunpack.c.l.b16 %v95
  %v135 = vunpack.c.l.b16 %v96
  %v136 = vunpack.c.l.b16 %v97
  %v137 = vunpack.c.l.b16 %v98
  %v138 = vpack.c.b16 %v123, %v122
  %v139 = vpack.c.b16 %v125, %v124
  %v140 = vpack.c.b16 %v127, %v126
  %v141 = vpack.c.b16 %v129, %v128
  %v142 = vpack.c.b16 %v131, %v130
  %v143 = vpack.c.b16 %v133, %v132
  %v144 = vpack.c.b16 %v135, %v134
  %v145 = vpack.c.b16 %v137, %v136
  %154 = vmatprep.subr.bf16.mxu0 0
  %155 = vmatpush1.bf16.msra.mxu0 %v138
  %156 = vmatprep.subr.bf16.mxu0 0
  %157 = vmatpush1.bf16.msra.mxu0 %v139
  %158 = vmatprep.subr.bf16.mxu0 0
  %159 = vmatpush1.bf16.msra.mxu0 %v140
  %160 = vmatprep.subr.bf16.mxu0 0
  %161 = vmatpush1.bf16.msra.mxu0 %v141
  %162 = vmatprep.subr.bf16.mxu0 0
  %163 = vmatpush1.bf16.msra.mxu0 %v142
  %164 = vmatprep.subr.bf16.mxu0 0
  %165 = vmatpush1.bf16.msra.mxu0 %v143
  %166 = vmatprep.subr.bf16.mxu0 0
  %167 = vmatpush1.bf16.msra.mxu0 %v144
  %168 = vmatprep.subr.bf16.mxu0 0
  %169 = vmatpush1.bf16.msra.mxu0 %v145
  %170 = vmatprep.subr.bf16.mxu0 0
  %171 = vmatpush1.bf16.msra.mxu0 0
  %172 = vmatprep.subr.bf16.mxu0 0
  %173 = vmatpush1.bf16.msra.mxu0 0
  %174 = vmatprep.subr.bf16.mxu0 0
  %175 = vmatpush1.bf16.msra.mxu0 0
  %176 = vmatprep.subr.bf16.mxu0 0
  %177 = vmatpush1.bf16.msra.mxu0 0
  %178 = vmatprep.subr.bf16.mxu0 0
  %179 = vmatpush1.bf16.msra.mxu0 0
  %180 = vmatprep.subr.bf16.mxu0 0
  %181 = vmatpush1.bf16.msra.mxu0 0
  %182 = vmatprep.subr.bf16.mxu0 0
  %183 = vmatpush1.bf16.msra.mxu0 0
  %184 = vmatprep.subr.bf16.mxu0 0
  %185 = vmatpush1.bf16.msra.mxu0 0
  %186 = vmatprep.mubr.bf16.mxu0 0
  %187 = vmatmul.mubr.bf16.gmra.mrb[0].mxu0 %v82
  %v188 = vpop.f32.mrb[0].mxu0
  %v189 = vadd.f32 %v104, %v188
  %v190 = vpop.f32.mrb[0].mxu0
  %v191 = vpop.f32.mrb[0].mxu0
  %v192 = vadd.f32 %v104, %v191
  %v193 = vpop.f32.mrb[0].mxu0
  %194 = vdwg.mxu0
  %v195 = vxor.u32 %v189, 2147483648
  %v196 = vxor.u32 %v192, 2147483648
  %v197 = vmul.f32 %v195, 1.442695
  %v198 = vpow.pop %v197
  %v199 = vmul.f32 %v196, 1.442695
  %v200 = vpow.pop %v199
  %v201 = vadd.f32 %v198, 1.0
  %v202 = vadd.f32 %v200, 1.0
  %v203 = vrcp.pop %v201
  %v204 = vmul.f32 1.0, %v203
  %v205 = vrcp.pop %v202
  %v206 = vmul.f32 1.0, %v205
  %v207 = vmul.f32 %v189, %v204
  %v208 = vmul.f32 %v192, %v206
  %v209 = vld [vmem:[#allocation3] sm:$0xff]
  %v210 = vld [vmem:[#allocation3 + $0x8] sm:$0xff]
  %v211 = vpack.c.bf16 %v208, %v207
  %v212 = vld [vmem:[%s5] sm:$0xf]
  %v213 = vld [vmem:[%s5 + $0x4] sm:$0xf]
  %v214 = vld [vmem:[%s5 + $0x8] sm:$0xf]
  %v215 = vld [vmem:[%s5 + $0xc] sm:$0xf]
  %v216 = vld [vmem:[%s5 + $0x10] sm:$0xf]
  %v217 = vld [vmem:[%s5 + $0x14] sm:$0xf]
  %v218 = vld [vmem:[%s5 + $0x18] sm:$0xf]
  %v219 = vld [vmem:[%s5 + $0x1c] sm:$0xf]
  %v220 = vld [vmem:[%s5 + $0x20] sm:$0xf]
  %v221 = vld [vmem:[%s5 + $0x24] sm:$0xf]
  %v222 = vld [vmem:[%s5 + $0x28] sm:$0xf]
  %v223 = vld [vmem:[%s5 + $0x2c] sm:$0xf]
  %v224 = vld [vmem:[%s5 + $0x30] sm:$0xf]
  %v225 = vld [vmem:[%s5 + $0x34] sm:$0xf]
  %v226 = vld [vmem:[%s5 + $0x38] sm:$0xf]
  %v227 = vld [vmem:[%s5 + $0x3c] sm:$0xf]
  %v244 = vunpack.c.l.b16 %v212
  %v245 = vunpack.c.l.b16 %v213
  %v246 = vunpack.c.l.b16 %v214
  %v247 = vunpack.c.l.b16 %v215
  %v248 = vunpack.c.l.b16 %v216
  %v249 = vunpack.c.l.b16 %v217
  %v250 = vunpack.c.l.b16 %v218
  %v251 = vunpack.c.l.b16 %v219
  %v252 = vunpack.c.l.b16 %v220
  %v253 = vunpack.c.l.b16 %v221
  %v254 = vunpack.c.l.b16 %v222
  %v255 = vunpack.c.l.b16 %v223
  %v256 = vunpack.c.l.b16 %v224
  %v257 = vunpack.c.l.b16 %v225
  %v258 = vunpack.c.l.b16 %v226
  %v259 = vunpack.c.l.b16 %v227
  %v260 = vpack.c.b16 %v245, %v244
  %v261 = vpack.c.b16 %v247, %v246
  %v262 = vpack.c.b16 %v249, %v248
  %v263 = vpack.c.b16 %v251, %v250
  %v264 = vpack.c.b16 %v253, %v252
  %v265 = vpack.c.b16 %v255, %v254
  %v266 = vpack.c.b16 %v257, %v256
  %v267 = vpack.c.b16 %v259, %v258
  %276 = vmatprep.subr.bf16.mxu0 0
  %277 = vmatpush1.bf16.msra.mxu0 %v260
  %278 = vmatprep.subr.bf16.mxu0 0
  %279 = vmatpush1.bf16.msra.mxu0 %v261
  %280 = vmatprep.subr.bf16.mxu0 0
  %281 = vmatpush1.bf16.msra.mxu0 %v262
  %282 = vmatprep.subr.bf16.mxu0 0
  %283 = vmatpush1.bf16.msra.mxu0 %v263
  %284 = vmatprep.subr.bf16.mxu0 0
  %285 = vmatpush1.bf16.msra.mxu0 %v264
  %286 = vmatprep.subr.bf16.mxu0 0
  %287 = vmatpush1.bf16.msra.mxu0 %v265
  %288 = vmatprep.subr.bf16.mxu0 0
  %289 = vmatpush1.bf16.msra.mxu0 %v266
  %290 = vmatprep.subr.bf16.mxu0 0
  %291 = vmatpush1.bf16.msra.mxu0 %v267
  %292 = vmatprep.subr.bf16.mxu0 0
  %293 = vmatpush1.bf16.msra.mxu0 0
  %294 = vmatprep.subr.bf16.mxu0 0
  %295 = vmatpush1.bf16.msra.mxu0 0
  %296 = vmatprep.subr.bf16.mxu0 0
  %297 = vmatpush1.bf16.msra.mxu0 0
  %298 = vmatprep.subr.bf16.mxu0 0
  %299 = vmatpush1.bf16.msra.mxu0 0
  %300 = vmatprep.subr.bf16.mxu0 0
  %301 = vmatpush1.bf16.msra.mxu0 0
  %302 = vmatprep.subr.bf16.mxu0 0
  %303 = vmatpush1.bf16.msra.mxu0 0
  %304 = vmatprep.subr.bf16.mxu0 0
  %305 = vmatpush1.bf16.msra.mxu0 0
  %306 = vmatprep.subr.bf16.mxu0 0
  %307 = vmatpush1.bf16.msra.mxu0 0
  %308 = vmatprep.mubr.bf16.mxu0 0
  %309 = vmatmul.mubr.bf16.gmra.mrb[0].mxu0 %v211
  %v310 = vpop.f32.mrb[0].mxu0
  %v311 = vadd.f32 0.0, %v310
  %v312 = vpop.f32.mrb[0].mxu0
  %v313 = vpop.f32.mrb[0].mxu0
  %v314 = vadd.f32 0.0, %v313
  %v315 = vpop.f32.mrb[0].mxu0
  %316 = vdwg.mxu0
  %v317 = vadd.f32 %v209, %v311
  %v318 = vadd.f32 %v210, %v314
  %319 = vst [vmem:[#allocation3] sm:$0xff] %v317
  %320 = vst [vmem:[#allocation3 + $0x8] sm:$0xff] %v318
  // Predicated region
  $region34: #{feed_forward_module.1} parent=0 // pred_check
    %p321 = pneg %p27
  $region35: #{feed_forward_module.1} parent=0 // pred_check_branch
    %323 = sbr.rel (%p321) target = $region37
  $region36: #{feed_forward_module.1} parent=0 // pred_region
    %v324 = vld [vmem:[#allocation3] sm:$0xff]
    %v325 = vld [vmem:[#allocation3 + $0x8] sm:$0xff]
    %v326 = vld [vmem:[%s6] sm:$0x1]
    %v328 = vlaneseq
    %v329 = vshrl.u32 %v328, 7
    %v330 = vsub.s32 0, %v329
    %v331 = vrot.slane %v326, %v330
    %v333 = vadd.f32 %v324, %v331
    %v334 = vadd.f32 %v325, %v331
    %335 = vst [vmem:[%s7] sm:$0xff] %v333
    %336 = vst [vmem:[%s7 + $0x8] sm:$0xff] %v334
  $region37: #{feed_forward_module.1} parent=0 // pred_fallthru
    _
  // Predicated region
  $region38: #{feed_forward_module.1} parent=0 // pred_check
    _
  $region39: #{feed_forward_module.1} parent=0 // pred_check_branch
    %338 = sbr.rel (0) target = $region41
  $region40: #{feed_forward_module.1} parent=0 // pred_region
    _
  $region41: #{feed_forward_module.1} parent=0 // pred_fallthru
    _
  // Predicated region
  $region42: #{feed_forward_module.1} parent=0 // pred_check
    _
  $region43: #{feed_forward_module.1} parent=0 // pred_check_branch
    %340 = sbr.rel (0) target = $region45
  $region44: #{feed_forward_module.1} parent=0 // pred_region
    _
  $region45: #{feed_forward_module.1} parent=0 // pred_fallthru
    _

</llo_original>
